<compile_context>
chip_gen: v7x
topology: tpu7x:2x2x1
jax: 0.10.0
libtpu: 0.0.40
codegen_flags: <defaults>
</compile_context>

<pallas_src>
import functools

import jax
import jax.numpy as jnp
from jax.experimental import pallas as pl
from jax.experimental.pallas import tpu as pltpu


def _round_up(x, m):
    return ((x + m - 1) // m) * m


def _round_down(x, m):
    return (x // m) * m


def _focal_loss_kernel(logits_ref, target_ref, out_ref, acc_ref, *,
                       gamma, do_sigmoid, assume_hard_targets,
                       true_rows, true_cols, tile_rows, tile_cols,
                       needs_row_mask, needs_col_mask):
    c = pl.program_id(0)            # row split across cores ("parallel")
    j = pl.program_id(1)            # C tile ("parallel")
    i = pl.program_id(2)            # row-tile reduction axis ("arbitrary")
    n_inner = pl.num_programs(2)

    @pl.when(i == 0)
    def _():
        acc_ref[...] = jnp.zeros_like(acc_ref)

    x = logits_ref[...].astype(jnp.float32)
    t = target_ref[...].astype(jnp.float32)

    if do_sigmoid:
        # Fused BCE-with-logits:
        #   log(sigmoid(x))     = -softplus(-x)
        #   log(1 - sigmoid(x)) = -softplus(x)
        # torch.nn.BCELoss clamps each log term at -100 -> clamp softplus at 100.
        e = jnp.exp(-jnp.abs(x))                   # exp(-|x|)
        sp = jnp.log1p(e)
        softplus_pos = jnp.maximum(x, 0.0) + sp    # softplus(x)
        softplus_neg = softplus_pos - x            # softplus(-x)
        ce = (t * jnp.minimum(softplus_neg, 100.0)
              + (1.0 - t) * jnp.minimum(softplus_pos, 100.0))
        if assume_hard_targets:
            # pt = p^t (1-p)^(1-t) == t*p + (1-t)*(1-p) for hard 0/1 targets.
            # One approx reciprocal instead of an extra exp (EUP relief on v7x).
            r = pl.reciprocal(1.0 + e, approx=True)
            p = jnp.where(x >= 0.0, r, e * r)        # sigmoid(x)
            one_m_p = jnp.where(x >= 0.0, e * r, r)  # 1 - sigmoid(x)
            pt = t * p + (1.0 - t) * one_m_p
        else:
            pt = jnp.exp(-ce)
    else:
        # TODO(synk): like torch.nn.BCELoss, inputs outside [0, 1] yield NaN here.
        log_p = jnp.maximum(jnp.log(x), -100.0)
        log_1mp = jnp.maximum(jnp.log(1.0 - x), -100.0)
        ce = -(t * log_p + (1.0 - t) * log_1mp)
        pt = jnp.exp(-ce)

    one_minus_pt = 1.0 - pt
    if float(gamma) == int(gamma) and 0 <= int(gamma) <= 8:
        n = int(gamma)
        if n == 0:
            mod = jnp.ones_like(ce)
        else:
            mod = one_minus_pt
            for _ in range(n - 1):                   # VPU multiplies, no EUP pow
                mod = mod * one_minus_pt
    else:
        mod = one_minus_pt ** float(gamma)
    focal = mod * ce

    def _accumulate(f):
        # (tb, tc) -> (tb//8, 8, tc) is a sublane-aligned regroup; the reduce
        # over the leading axis is plain VALU adds.  The final 8->1 reduce
        # happens once in the wrapper.
        acc_ref[...] += f.reshape(tile_rows // 8, 8, tile_cols).sum(axis=0)

    if needs_row_mask or needs_col_mask:
        row0 = (c * n_inner + i) * tile_rows
        col0 = j * tile_cols
        edge = None
        if needs_row_mask:
            edge = row0 + tile_rows > true_rows
        if needs_col_mask:
            col_edge = col0 + tile_cols > true_cols
            edge = col_edge if edge is None else jnp.logical_or(edge, col_edge)

        @pl.when(edge)
        def _():
            # jnp.where (a select) is essential here: the out-of-range region of
            # an edge block holds unspecified values (possibly NaN/Inf) and must
            # not be masked arithmetically.
            f = focal
            if needs_row_mask:
                rows = jax.lax.broadcasted_iota(jnp.int32, (tile_rows, 1), 0) + row0
                f = jnp.where(rows < true_rows, f, 0.0)
            if needs_col_mask:
                cols = jax.lax.broadcasted_iota(jnp.int32, (1, tile_cols), 1) + col0
                f = jnp.where(cols < true_cols, f, 0.0)
            _accumulate(f)

        @pl.when(jnp.logical_not(edge))
        def _():
            _accumulate(focal)
    else:
        _accumulate(focal)

    @pl.when(i == n_inner - 1)
    def _():
        out_ref[...] = acc_ref[...].reshape(out_ref.shape)


def focal_loss(predicted_logits, target, *, gamma=2.0, do_sigmoid=True,
               reduction="mean", assume_hard_targets=False):
    """Pallas TPU implementation of FocalLoss.forward (weight=None, reduction='mean')."""
    assert predicted_logits.shape == target.shape
    assert predicted_logits.ndim == 2
    if reduction != "mean":
        # TODO(synk): 'none' reduction would return the full (B, C) focal map.
        raise NotImplementedError("only reduction='mean' is implemented")

    B, C = predicted_logits.shape

    # --- generation-aware budgets -------------------------------------------
    try:
        vmem_cap = int(pltpu.get_tpu_info().vmem_capacity_bytes)
    except Exception:
        vmem_cap = 64 * 1024 * 1024            # conservative (v7x-sized) fallback
    small_vmem = vmem_cap <= 96 * 1024 * 1024  # v7x: 64 MiB; v5e/v6e: 128 MiB
    # Element budget per input block; f32 intermediates dominate VMEM pressure,
    # so an element (not byte) budget keeps the live-set bounded for any dtype.
    blk_elems = (512 if small_vmem else 1024) * 1024
    vmem_limit = (48 if small_vmem else 80) * 1024 * 1024

    try:
        kind = jax.devices()[0].device_kind.lower()
    except Exception:
        kind = ""
    multi_core = ("v7" in kind) or ("7x" in kind)   # 2 TensorCores per chip

    # Sublane multiple required by the input dtypes (f32 -> 8, bf16 -> 16, 8-bit -> 32).
    def _sub_mult(dt):
        return 8 * max(1, 4 // jnp.dtype(dt).itemsize)

    row_mult = max(_sub_mult(predicted_logits.dtype), _sub_mult(target.dtype))

    # --- lane (C) tiling ------------------------------------------------------
    if C <= blk_elems // row_mult:
        tc = C                                   # full width (any C is legal here)
    else:
        tc = max(128, _round_down(blk_elems // row_mult, 128))
    n_ctiles = pl.cdiv(C, tc)

    # --- row (B) tiling -------------------------------------------------------
    tb = _round_down(max(blk_elems // tc, row_mult), row_mult)
    tb = max(row_mult, min(tb, _round_up(B, row_mult)))
    n_row_tiles = pl.cdiv(B, tb)

    nc = 2 if (multi_core and n_row_tiles >= 2) else 1
    inner_tiles = pl.cdiv(n_row_tiles, nc)

    needs_row_mask = (nc * inner_tiles * tb) != B
    needs_col_mask = (n_ctiles * tc) != C

    kernel = functools.partial(
        _focal_loss_kernel,
        gamma=float(gamma),
        do_sigmoid=bool(do_sigmoid),
        assume_hard_targets=bool(assume_hard_targets),
        true_rows=B, true_cols=C,
        tile_rows=tb, tile_cols=tc,
        needs_row_mask=needs_row_mask, needs_col_mask=needs_col_mask,
    )

    partials = pl.pallas_call(
        kernel,
        out_shape=jax.ShapeDtypeStruct((nc, n_ctiles, 8, tc), jnp.float32),
        grid_spec=pltpu.PrefetchScalarGridSpec(
            num_scalar_prefetch=0,
            grid=(nc, n_ctiles, inner_tiles),
            in_specs=[
                pl.BlockSpec((tb, tc), lambda c, j, i: (c * inner_tiles + i, j)),
                pl.BlockSpec((tb, tc), lambda c, j, i: (c * inner_tiles + i, j)),
            ],
            out_specs=pl.BlockSpec((1, 1, 8, tc), lambda c, j, i: (c, j, 0, 0)),
            scratch_shapes=[pltpu.VMEM((8, tc), jnp.float32)],
        ),
        compiler_params=pltpu.CompilerParams(
            dimension_semantics=("parallel", "parallel", "arbitrary"),
            vmem_limit_bytes=vmem_limit,
        ),
    )(predicted_logits, target)

    # Tiny final cross-sublane/lane/tile reduction + mean over the TRUE count.
    # TODO(synk): for astronomically large B, per-lane f32 accumulation could
    # lose precision vs. a pairwise mean; chunked accumulation would fix it.
    return jnp.sum(partials) / jnp.float32(B * C)


def focal_loss_ref(predicted_logits, target, *, gamma=2.0):
    """Pure-JAX reference mirroring the PyTorch module exactly."""
    p = jax.nn.sigmoid(predicted_logits.astype(jnp.float32))
    t = target.astype(jnp.float32)
    log_p = jnp.maximum(jnp.log(p), -100.0)
    log_1mp = jnp.maximum(jnp.log(1.0 - p), -100.0)
    ce = -(t * log_p + (1.0 - t) * log_1mp)
    pt = jnp.exp(-ce)
    return jnp.mean((1.0 - pt) ** gamma * ce)


if __name__ == "__main__":
    key = jax.random.PRNGKey(0)
    k1, k2, k3, k4 = jax.random.split(key, 4)

    # [batch_size, n_classes] as in the module docstring.
    B, C = 8, 128
    predicted_logits = jax.random.normal(k1, (B, C), dtype=jnp.float32)
    # BCE targets must lie in [0, 1]; use hard 0/1 labels.
    target = jax.random.bernoulli(k2, 0.5, (B, C)).astype(jnp.float32)

    loss = jax.block_until_ready(
        focal_loss(predicted_logits, target, gamma=2.0, do_sigmoid=True))
    ref = focal_loss_ref(predicted_logits, target, gamma=2.0)
    assert jnp.allclose(loss, ref, rtol=1e-5, atol=1e-6), (loss, ref)

    # Ragged batch (exercises the no-pad edge-block + where-mask path) and the
    # cheaper hard-target pt path (approx reciprocal -> slightly looser tol).
    B2, C2 = 13, 128
    logits2 = jax.random.normal(k3, (B2, C2), dtype=jnp.float32)
    target2 = jax.random.bernoulli(k4, 0.5, (B2, C2)).astype(jnp.float32)

    loss2 = jax.block_until_ready(
        focal_loss(logits2, target2, gamma=2.0, do_sigmoid=True,
                   assume_hard_targets=True))
    ref2 = focal_loss_ref(logits2, target2, gamma=2.0)
    assert jnp.allclose(loss2, ref2, rtol=2e-3, atol=1e-5), (loss2, ref2)

    print("KERNEL_OK")
</pallas_src>

<mosaic_0001>
module attributes {stable_mosaic.version = 11 : i64} {
  func.func @_focal_loss_kernel(%arg0: i32, %arg1: i32, %arg2: i32, %arg3: memref<8x128xf32, #tpu.memory_space<vmem>>, %arg4: memref<8x128xf32, #tpu.memory_space<vmem>>, %arg5: memref<1x1x8x128xf32, #tpu.memory_space<vmem>>, %arg6: memref<8x128xf32, #tpu.memory_space<vmem>>) attributes {dimension_semantics = [#tpu.dimension_semantics<parallel>, #tpu.dimension_semantics<parallel>, #tpu.dimension_semantics<arbitrary>], iteration_bounds = array<i64: 1, 1, 1>, scalar_prefetch = 0 : i64, scratch_operands = 1 : i64, tpu.core_type = #tpu.core_type<tc>, window_params = [{transform_indices = @transform_0, window_bounds = array<i64: 8, 128>}, {transform_indices = @transform_1, window_bounds = array<i64: 8, 128>}, {transform_indices = @transform_2, window_bounds = array<i64: 1, 1, 8, 128>}]} {
    %c0_i32 = arith.constant 0 : i32
    %0 = arith.cmpi eq, %arg2, %c0_i32 : i32
    %1 = arith.extui %0 : i1 to i32
    %c0_i32_0 = arith.constant 0 : i32
    %2 = arith.cmpi ne, %1, %c0_i32_0 : i32
    scf.if %2 {
      %cst_17 = arith.constant 0.000000e+00 : f32
      %38 = vector.broadcast %cst_17 : f32 to vector<8x128xf32>
      %c0_18 = arith.constant 0 : index
      %c0_19 = arith.constant 0 : index
      %39 = vector.load %arg6[%c0_18, %c0_19] : memref<8x128xf32, #tpu.memory_space<vmem>>, vector<8x128xf32>
      tpu.vector_store %arg6[%c0_18, %c0_19], %38 {strides = array<i32>} : memref<8x128xf32, #tpu.memory_space<vmem>>, vector<8x128xf32>,
    } else {
    }
    %c0 = arith.constant 0 : index
    %c0_1 = arith.constant 0 : index
    %3 = vector.load %arg3[%c0, %c0_1] : memref<8x128xf32, #tpu.memory_space<vmem>>, vector<8x128xf32>
    %c0_2 = arith.constant 0 : index
    %c0_3 = arith.constant 0 : index
    %4 = vector.load %arg4[%c0_2, %c0_3] : memref<8x128xf32, #tpu.memory_space<vmem>>, vector<8x128xf32>
    %5 = math.absf %3 : vector<8x128xf32>
    %cst = arith.constant 0.000000e+00 : f32
    %6 = vector.broadcast %cst : f32 to vector<8x128xf32>
    %7 = arith.subf %6, %5 : vector<8x128xf32>
    %8 = math.exp %7 : vector<8x128xf32>
    %9 = math.log1p %8 : vector<8x128xf32>
    %cst_4 = arith.constant 0.000000e+00 : f32
    %10 = vector.broadcast %cst_4 : f32 to vector<8x128xf32>
    %11 = arith.maximumf %3, %10 : vector<8x128xf32>
    %12 = arith.addf %11, %9 : vector<8x128xf32>
    %13 = arith.subf %12, %3 : vector<8x128xf32>
    %cst_5 = arith.constant 1.000000e+02 : f32
    %14 = vector.broadcast %cst_5 : f32 to vector<8x128xf32>
    %15 = arith.minimumf %13, %14 : vector<8x128xf32>
    %16 = arith.mulf %4, %15 : vector<8x128xf32>
    %cst_6 = arith.constant 1.000000e+00 : f32
    %17 = vector.broadcast %cst_6 : f32 to vector<8x128xf32>
    %18 = arith.subf %17, %4 : vector<8x128xf32>
    %cst_7 = arith.constant 1.000000e+02 : f32
    %19 = vector.broadcast %cst_7 : f32 to vector<8x128xf32>
    %20 = arith.minimumf %12, %19 : vector<8x128xf32>
    %21 = arith.mulf %18, %20 : vector<8x128xf32>
    %22 = arith.addf %16, %21 : vector<8x128xf32>
    %cst_8 = arith.constant 0.000000e+00 : f32
    %23 = vector.broadcast %cst_8 : f32 to vector<8x128xf32>
    %24 = arith.subf %23, %22 : vector<8x128xf32>
    %25 = math.exp %24 : vector<8x128xf32>
    %cst_9 = arith.constant 1.000000e+00 : f32
    %26 = vector.broadcast %cst_9 : f32 to vector<8x128xf32>
    %27 = arith.subf %26, %25 : vector<8x128xf32>
    %28 = arith.mulf %27, %27 : vector<8x128xf32>
    %29 = arith.mulf %28, %22 : vector<8x128xf32>
    %c0_10 = arith.constant 0 : index
    %c0_11 = arith.constant 0 : index
    %30 = vector.load %arg6[%c0_10, %c0_11] : memref<8x128xf32, #tpu.memory_space<vmem>>, vector<8x128xf32>
    %31 = vector.shape_cast %29 : vector<8x128xf32> to vector<1x8x128xf32>
    %cst_12 = arith.constant dense<0.000000e+00> : vector<8x128xf32>
    %32 = vector.multi_reduction <add>, %31, %cst_12 [0] : vector<1x8x128xf32> to vector<8x128xf32>
    %33 = arith.addf %30, %32 : vector<8x128xf32>
    %c0_13 = arith.constant 0 : index
    %c0_14 = arith.constant 0 : index
    %34 = vector.load %arg6[%c0_13, %c0_14] : memref<8x128xf32, #tpu.memory_space<vmem>>, vector<8x128xf32>
    tpu.vector_store %arg6[%c0_13, %c0_14], %33 {strides = array<i32>} : memref<8x128xf32, #tpu.memory_space<vmem>>, vector<8x128xf32>,
    %c0_i32_15 = arith.constant 0 : i32
    %35 = arith.cmpi eq, %arg2, %c0_i32_15 : i32
    %36 = arith.extui %35 : i1 to i32
    %c0_i32_16 = arith.constant 0 : i32
    %37 = arith.cmpi ne, %36, %c0_i32_16 : i32
    scf.if %37 {
      %c0_17 = arith.constant 0 : index
      %c0_18 = arith.constant 0 : index
      %38 = vector.load %arg6[%c0_17, %c0_18] : memref<8x128xf32, #tpu.memory_space<vmem>>, vector<8x128xf32>
      %39 = vector.shape_cast %38 : vector<8x128xf32> to vector<1x1x8x128xf32>
      %c0_19 = arith.constant 0 : index
      %c0_20 = arith.constant 0 : index
      %c0_21 = arith.constant 0 : index
      %c0_22 = arith.constant 0 : index
      %40 = vector.load %arg5[%c0_19, %c0_20, %c0_21, %c0_22] : memref<1x1x8x128xf32, #tpu.memory_space<vmem>>, vector<1x1x8x128xf32>
      tpu.vector_store %arg5[%c0_19, %c0_20, %c0_21, %c0_22], %39 {strides = array<i32>} : memref<1x1x8x128xf32, #tpu.memory_space<vmem>>, vector<1x1x8x128xf32>,
    } else {
    }
    return
  }
  func.func @transform_0(%arg0: i32, %arg1: i32, %arg2: i32) -> (i32, i32) {
    %c1_i32 = arith.constant 1 : i32
    %0 = arith.muli %arg0, %c1_i32 : i32
    %1 = arith.addi %0, %arg2 : i32
    %c0_i32 = arith.constant 0 : i32
    return %1, %arg1 : i32, i32
  }
  func.func @transform_1(%arg0: i32, %arg1: i32, %arg2: i32) -> (i32, i32) {
    %c1_i32 = arith.constant 1 : i32
    %0 = arith.muli %arg0, %c1_i32 : i32
    %1 = arith.addi %0, %arg2 : i32
    %c0_i32 = arith.constant 0 : i32
    return %1, %arg1 : i32, i32
  }
  func.func @transform_2(%arg0: i32, %arg1: i32, %arg2: i32) -> (i32, i32, i32, i32) {
    %c0_i32 = arith.constant 0 : i32
    %c0_i32_0 = arith.constant 0 : i32
    %c0_i32_1 = arith.constant 0 : i32
    return %arg0, %arg1, %c0_i32, %c0_i32_0 : i32, i32, i32, i32
  }
}

</mosaic_0001>

<llo_original>
// kernel: tpu_custom_call.1
$region0: #{tpu_custom_call.1}
  #allocation0 [shape = 'u32[]', space=smem, size = 0x4, offset = 0x4, fixed_abs, tag = 'smem constant byte address 0x4 - core index']
  #allocation1 [shape = 'u32[144,128]{1,0:T(1,128)}', space=vmem, size = 0x12000, scoped, tag = 'internal scratch']
  #allocation2 [shape = 'f32[8,128]{1,0:T(8,128)}', space=vmem, size = 0x1000, scoped, tag = 'scratch operand']
  %s0 = inlined_call_operand.hbm [shape: f32[8,128], index: 0, kind: input, shape index: {}]
  %s1 = inlined_call_operand.hbm [shape: f32[8,128], index: 1, kind: input, shape index: {}]
  %s2 = inlined_call_operand.hbm [shape: f32[1,1,8,128], index: 2, kind: output, shape index: {}]
  %s3 = sld [smem:[#allocation0]]
  $region34: #{tpu_custom_call.1} parent=0
    _
  %s5 = ssub.s32 1, %s3
  %s6 = scalar_select 0, %s5, %s3
  $region1: #{tpu_custom_call.1} parent=0
    #allocation3 [shape = 'u8[4096]{0}', space=vmem, size = 0x1000, scoped, tag = 'input window, operand 0, single buffered']
    #allocation4 [shape = 's32[1]{0}', space=sflag, size = 0x4, scoped, tag = 'scoped memory for tpu_custom_call.1']
    #allocation5 [shape = 's32[1]{0}', space=sflag, size = 0x4, scoped, tag = 'scoped memory for tpu_custom_call.1']
    #allocation6 [shape = 'u8[4096]{0}', space=vmem, size = 0x1000, scoped, tag = 'input window, operand 1, single buffered']
    #allocation7 [shape = 's32[1]{0}', space=sflag, size = 0x4, scoped, tag = 'scoped memory for tpu_custom_call.1']
    #allocation8 [shape = 'u8[4096]{0}', space=vmem, size = 0x1000, scoped, tag = 'output window, operand 0, single buffered']
    %7 = vsyncpa [#allocation4], 0
    %8 = vsyncpa [#allocation7], 0
    %9 = vsyncpa [#allocation5], 0
    // Predicated region
    $region2: #{tpu_custom_call.1} parent=1 // pred_check
      _
    $region3: #{tpu_custom_call.1} parent=1 // pred_check_branch
      %11 = sbr.rel (0) target = $region5
    $region4: #{tpu_custom_call.1} parent=1 // pred_region
      %s12 = sadd.s32 0, 0
      %s14 = ssub.s32 128, 128
      %15 = vsyncadd [#allocation4], %s14
      %s16 = smul.addr %s12, 128
      %s17 = scalar_lea.hbm %s0, %s16
      %s19 = sshll.u32 [#allocation3], 4
      %s20 = int_to_ptr.vmem [resolvable:$true] %s19
      %22 = dma.hbm_to_vmem [thread:$0]  %s17, 128, %s20, [#allocation4]
    $region5: #{tpu_custom_call.1} parent=1 // pred_fallthru
      _
    // Predicated region
    $region6: #{tpu_custom_call.1} parent=1 // pred_check
      _
    $region7: #{tpu_custom_call.1} parent=1 // pred_check_branch
      %24 = sbr.rel (0) target = $region9
    $region8: #{tpu_custom_call.1} parent=1 // pred_region
      %s25 = sadd.s32 0, 0
      %s27 = ssub.s32 128, 128
      %28 = vsyncadd [#allocation7], %s27
      %s29 = smul.addr %s25, 128
      %s30 = scalar_lea.hbm %s1, %s29
      %s32 = sshll.u32 [#allocation6], 4
      %s33 = int_to_ptr.vmem [resolvable:$true] %s32
      %35 = dma.hbm_to_vmem [thread:$0]  %s30, 128, %s33, [#allocation7]
    $region9: #{tpu_custom_call.1} parent=1 // pred_fallthru
      _
    // Predicated region
    $region10: #{tpu_custom_call.1} parent=1 // pred_check
      _
    $region11: #{tpu_custom_call.1} parent=1 // pred_check_branch
      %37 = sbr.rel (0) target = $region13
    $region12: #{tpu_custom_call.1} parent=1 // pred_region
      %38 = dma.done [#allocation4], 128
    $region13: #{tpu_custom_call.1} parent=1 // pred_fallthru
      _
    // Predicated region
    $region14: #{tpu_custom_call.1} parent=1 // pred_check
      _
    $region15: #{tpu_custom_call.1} parent=1 // pred_check_branch
      %40 = sbr.rel (0) target = $region17
    $region16: #{tpu_custom_call.1} parent=1 // pred_region
      %41 = dma.done [#allocation7], 128
    $region17: #{tpu_custom_call.1} parent=1 // pred_fallthru
      _
    %s42 = sadd.s32 0, 0
    %s43 = sadd.s32 0, 0
    %p44 = scmp.eq.s32.totalorder 0, 0
    // Predicated region
    $region18: #{tpu_custom_call.1} parent=1 // pred_check
      %p45 = pneg %p44
    $region19: #{tpu_custom_call.1} parent=1 // pred_check_branch
      %47 = sbr.rel (%p45) target = $region21
    $region20: #{tpu_custom_call.1} parent=1 // pred_region
      %48 = vst [vmem:[#allocation2] sm:$0xff] 0.0
    $region21: #{tpu_custom_call.1} parent=1 // pred_fallthru
      _
    %v49 = vld [vmem:[#allocation3] sm:$0xff]
    %v50 = vld [vmem:[#allocation6] sm:$0xff]
    %v51 = vand.u32 2147483647, %v49
    %v52 = vsub.f32 0.0, %v51
    %v53 = vmul.f32 %v52, 1.442695
    %v54 = vpow.pop %v53
    %v55 = vadd.f32 %v54, 1.0
    %v56 = vlog2.pop %v55
    %v57 = vmul.f32 %v56, 0.6931472
    %v58 = vmul.f32 -0.5, %v54
    %v59 = vadd.f32 %v58, 1.0
    %v60 = vmul.f32 %v59, %v54
    %v61 = vand.u32 2147483647, %v54
    %vm62 = vcmp.lt.f32.partialorder %v61, 0.0004427343
    %v63 = vsel %vm62, %v60, %v57
    %v64 = vmax.f32 %v49, 0.0
    %v65 = vadd.f32 %v64, %v63
    %v66 = vsub.f32 %v65, %v49
    %v67 = vmin.f32 %v66, 100.0
    %v68 = vmul.f32 %v50, %v67
    %v69 = vsub.f32 1.0, %v50
    %v70 = vmin.f32 %v65, 100.0
    %v71 = vmul.f32 %v69, %v70
    %v72 = vadd.f32 %v68, %v71
    %v73 = vsub.f32 0.0, %v72
    %v74 = vmul.f32 %v73, 1.442695
    %v75 = vpow.pop %v74
    %v76 = vsub.f32 1.0, %v75
    %v77 = vmul.f32 %v76, %v76
    %v78 = vmul.f32 %v77, %v72
    %v79 = vld [vmem:[#allocation2] sm:$0xff]
    %v80 = vadd.f32 %v78, 0.0
    %v81 = vadd.f32 %v79, %v80
    %82 = vst [vmem:[#allocation2] sm:$0xff] %v81
    // Predicated region
    $region22: #{tpu_custom_call.1} parent=1 // pred_check
      %p83 = pneg %p44
    $region23: #{tpu_custom_call.1} parent=1 // pred_check_branch
      %85 = sbr.rel (%p83) target = $region25
    $region24: #{tpu_custom_call.1} parent=1 // pred_region
      %v86 = vld [vmem:[#allocation2] sm:$0xff]
      %87 = vst [vmem:[#allocation8] sm:$0xff] %v86
    $region25: #{tpu_custom_call.1} parent=1 // pred_fallthru
      _
    // Predicated region
    $region26: #{tpu_custom_call.1} parent=1 // pred_check
      _
    $region27: #{tpu_custom_call.1} parent=1 // pred_check_branch
      %89 = sbr.rel (0) target = $region29
    $region28: #{tpu_custom_call.1} parent=1 // pred_region
      %s91 = ssub.s32 128, 128
      %92 = vsyncadd [#allocation5], %s91
      %s94 = sshll.u32 [#allocation8], 4
      %s95 = int_to_ptr.vmem [resolvable:$true] %s94
      %97 = dma.vmem_to_hbm [thread:$0]  %s95, 128, %s2, [#allocation5]
    $region29: #{tpu_custom_call.1} parent=1 // pred_fallthru
      _
    // Predicated region
    $region30: #{tpu_custom_call.1} parent=1 // pred_check
      _
    $region31: #{tpu_custom_call.1} parent=1 // pred_check_branch
      %99 = sbr.rel (0) target = $region33
    $region32: #{tpu_custom_call.1} parent=1 // pred_region
      %100 = dma.done [#allocation5], 128
    $region33: #{tpu_custom_call.1} parent=1 // pred_fallthru
      _
    %101 = vsyncpa [#allocation4], 1
    %102 = vsyncpa [#allocation7], 1
    %103 = vsyncpa [#allocation5], 1

</llo_original>
